<compile_context>
chip_gen: v7x
topology: tpu7x:2x2x1
jax: 0.10.0
libtpu: 0.0.40
codegen_flags: <defaults>
</compile_context>

<pallas_src>
import math

import jax
import jax.numpy as jnp
from jax.experimental import pallas as pl
from jax.experimental.pallas import tpu as pltpu

_LANE_CANDIDATES = (8192, 4096, 2048, 1024, 512, 256, 128)
_SMALL_BYTES = 2 * 1024 * 1024        # below this, launch overhead dominates -> pure reshape


def _copy_kernel(x_ref, o_ref):
    # Straight VMEM tile copy (identity).
    o_ref[...] = x_ref[...]


def _target_block_bytes():
    """Generation-aware per-block footprint cap."""
    try:
        vmem = pltpu.get_tpu_info().vmem_capacity_bytes
    except Exception:
        vmem = 64 * 1024 * 1024        # conservative (v7x) fallback
    if vmem <= 64 * 1024 * 1024:
        return 8 * 1024 * 1024         # v7x: 2 bufs x (in+out) x 8 MiB = 32 MiB << 64 MiB
    return 16 * 1024 * 1024            # v5e/v6e: plenty of headroom in 128 MiB


def _sublane_granule(dtype):
    """Row granularity matching dtype sublane packing (f32->8, bf16->16, i8/fp8->32)."""
    itemsize = jnp.dtype(dtype).itemsize
    return max(8, (4 // max(itemsize, 1)) * 8)


def _pick_block_rows(rows, cap_rows, granule):
    """Largest granule-multiple <= cap_rows that divides rows (avoid masked tail),
    falling back to the capped granule-multiple if no divisor exists."""
    cap_rows = max(granule, (cap_rows // granule) * granule)
    if rows <= cap_rows:
        return rows
    r = cap_rows
    while r >= granule:
        if rows % r == 0:
            return r
        r -= granule
    return cap_rows


def _materialized_copy_2d(x2d):
    """Identity copy of a 2-D array via a row-tiled, double-buffered Pallas grid.

    Legal for any column count: the last block dim always equals the full
    array dim, so non-128-divisible columns still lower cleanly.
    """
    rows, cols = x2d.shape
    itemsize = jnp.dtype(x2d.dtype).itemsize
    bytes_per_row = max(cols * itemsize, 1)

    target = _target_block_bytes()
    granule = _sublane_granule(x2d.dtype)
    cap_rows = max(granule, target // bytes_per_row)
    block_rows = min(_pick_block_rows(rows, cap_rows, granule), rows)
    grid = (pl.cdiv(rows, block_rows),)

    # vmem_limit derived from the chosen block (in + out, double-buffered) + headroom.
    block_bytes = block_rows * bytes_per_row
    vmem_limit = int(min(max(4 * block_bytes + (8 << 20), 16 << 20), 96 << 20))

    return pl.pallas_call(
        _copy_kernel,
        out_shape=jax.ShapeDtypeStruct((rows, cols), x2d.dtype),
        grid=grid,
        in_specs=[pl.BlockSpec((block_rows, cols), lambda i: (i, 0))],
        out_specs=pl.BlockSpec((block_rows, cols), lambda i: (i, 0)),
        compiler_params=pltpu.CompilerParams(
            dimension_semantics=("parallel",),
            vmem_limit_bytes=vmem_limit,
        ),
    )(x2d)


def unflatten(x, batch_size=None, *dims, materialize=True,
              min_materialize_bytes=_SMALL_BYTES):
    """JAX/Pallas equivalent of Unflatten(batch_size, *dims).forward(x)."""
    if batch_size is None:
        batch_size = x.shape[0]
    total = math.prod(x.shape)

    dims = list(dims)
    # torch.view-style single -1 inference.
    if dims.count(-1) == 1:
        known = batch_size * math.prod(d for d in dims if d != -1)
        if known == 0 or total % known != 0:
            raise ValueError(
                f"cannot infer -1 in shape ({batch_size}, {tuple(dims)}) from {total} elements")
        dims[dims.index(-1)] = total // known
    feat = math.prod(dims) if dims else 1
    if batch_size * feat != total:
        raise ValueError(
            f"cannot view array of size {total} as ({batch_size}, {tuple(dims)})")

    out_shape = (batch_size, *dims)
    nbytes = total * jnp.dtype(x.dtype).itemsize

    if not materialize or nbytes < min_materialize_bytes:
        # Unflatten is a pure view: metadata-only reshape, zero HBM traffic.
        # (This is the truly optimal path — the copy below is only for callers
        # that need an independent output buffer.)
        return jnp.reshape(x, out_shape)

    # Lane-dense re-flattening, independent of the user-supplied dims.
    lanes = next((c for c in _LANE_CANDIDATES if total % c == 0), None)
    if lanes is not None:
        out2d = _materialized_copy_2d(jnp.reshape(x, (total // lanes, lanes)))
    else:
        # TODO(synk): for huge non-128-divisible totals, pad to a 1024 multiple,
        # run the lane-dense path and slice back; row tiling with a full-width
        # last dim is correct and pipelined but its stores are masked.
        out2d = _materialized_copy_2d(jnp.reshape(x, (batch_size, feat)))

    # Final view: (batch, *dims) — pure metadata, matches torch .view().
    return jnp.reshape(out2d, out_shape)


if __name__ == "__main__":
    key = jax.random.PRNGKey(0)
    batch, c, h, w = 2, 4, 16, 16

    # Module configured as Unflatten(None, 4, 16, 16): flattened activation
    # (2, 4*16*16) in -> (2, 4, 16, 16) out.  Small input -> metadata fast path.
    x_flat = jax.random.normal(key, (batch, c * h * w), dtype=jnp.float32)
    ref = jnp.reshape(x_flat, (batch, c, h, w))

    y = unflatten(x_flat, None, c, h, w)
    jax.block_until_ready(y)
    assert y.shape == (batch, c, h, w) and y.dtype == x_flat.dtype
    assert bool(jnp.all(y == ref))

    # Explicit batch_size branch.
    y2 = unflatten(x_flat, batch, c, h, w)
    jax.block_until_ready(y2)
    assert bool(jnp.all(y2 == ref))

    # torch.view-style -1 inference.
    y3 = unflatten(x_flat, None, c, -1, w)
    jax.block_until_ready(y3)
    assert y3.shape == (batch, c, h, w)
    assert bool(jnp.all(y3 == ref))

    # Force the Pallas lane-dense tiled copy path (independent output buffer).
    y4 = unflatten(x_flat, None, c, h, w, min_materialize_bytes=0)
    jax.block_until_ready(y4)
    assert bool(jnp.all(y4 == ref))

    # Non-128-divisible feature size exercises the row-tiled full-width path.
    x_odd = jax.random.normal(key, (batch, 3 * 5 * 7), dtype=jnp.float32)
    y5 = unflatten(x_odd, None, 3, 5, 7, min_materialize_bytes=0)
    jax.block_until_ready(y5)
    assert bool(jnp.all(y5 == jnp.reshape(x_odd, (batch, 3, 5, 7))))

    # Moderately sized lane-dense copy (2 MiB) to exercise the multi-step grid.
    x2d = jax.random.normal(key, (512, 1024), dtype=jnp.float32)
    y6 = _materialized_copy_2d(x2d)
    jax.block_until_ready(y6)
    assert bool(jnp.all(y6 == x2d))

    # Metadata-only path (explicit).
    y7 = unflatten(x_flat, None, c, h, w, materialize=False)
    jax.block_until_ready(y7)
    assert bool(jnp.all(y7 == ref))

    print("KERNEL_OK")
</pallas_src>

<mosaic_0001>
module attributes {stable_mosaic.version = 11 : i64} {
  func.func @_copy_kernel(%arg0: i32, %arg1: memref<1x2048xf32, #tpu.memory_space<vmem>>, %arg2: memref<1x2048xf32, #tpu.memory_space<vmem>>) attributes {dimension_semantics = [#tpu.dimension_semantics<parallel>], iteration_bounds = array<i64: 1>, scalar_prefetch = 0 : i64, scratch_operands = 0 : i64, tpu.core_type = #tpu.core_type<tc>, window_params = [{transform_indices = @transform_0, window_bounds = array<i64: 1, 2048>}, {transform_indices = @transform_1, window_bounds = array<i64: 1, 2048>}]} {
    %c0 = arith.constant 0 : index
    %c0_0 = arith.constant 0 : index
    %0 = vector.load %arg1[%c0, %c0_0] : memref<1x2048xf32, #tpu.memory_space<vmem>>, vector<1x2048xf32>
    %c0_1 = arith.constant 0 : index
    %c0_2 = arith.constant 0 : index
    %1 = vector.load %arg2[%c0_1, %c0_2] : memref<1x2048xf32, #tpu.memory_space<vmem>>, vector<1x2048xf32>
    tpu.vector_store %arg2[%c0_1, %c0_2], %0 {strides = array<i32>} : memref<1x2048xf32, #tpu.memory_space<vmem>>, vector<1x2048xf32>,
    return
  }
  func.func @transform_0(%arg0: i32) -> (i32, i32) {
    %c0_i32 = arith.constant 0 : i32
    %c0_i32_0 = arith.constant 0 : i32
    return %arg0, %c0_i32 : i32, i32
  }
  func.func @transform_1(%arg0: i32) -> (i32, i32) {
    %c0_i32 = arith.constant 0 : i32
    %c0_i32_0 = arith.constant 0 : i32
    return %arg0, %c0_i32 : i32, i32
  }
}

</mosaic_0001>

<llo_original>
// kernel: tpu_custom_call.1
$region0: #{tpu_custom_call.1}
  #allocation0 [shape = 'u32[]', space=smem, size = 0x4, offset = 0x4, fixed_abs, tag = 'smem constant byte address 0x4 - core index']
  #allocation1 [shape = 'u32[144,128]{1,0:T(1,128)}', space=vmem, size = 0x12000, scoped, tag = 'internal scratch']
  %s0 = inlined_call_operand.hbm [shape: f32[1,2048], index: 0, kind: input, shape index: {}]
  %s1 = inlined_call_operand.hbm [shape: f32[1,2048], index: 1, kind: output, shape index: {}]
  %s2 = sld [smem:[#allocation0]]
  $region18: #{tpu_custom_call.1} parent=0
    _
  %s4 = ssub.s32 1, %s2
  %s5 = scalar_select 0, %s4, %s2
  $region1: #{tpu_custom_call.1} parent=0
    #allocation2 [shape = 'u8[8192]{0}', space=vmem, size = 0x2000, scoped, tag = 'input window, operand 0, single buffered']
    #allocation3 [shape = 's32[1]{0}', space=sflag, size = 0x4, scoped, tag = 'scoped memory for tpu_custom_call.1']
    #allocation4 [shape = 's32[1]{0}', space=sflag, size = 0x4, scoped, tag = 'scoped memory for tpu_custom_call.1']
    #allocation5 [shape = 'u8[8192]{0}', space=vmem, size = 0x2000, scoped, tag = 'output window, operand 0, single buffered']
    %6 = vsyncpa [#allocation3], 0
    %7 = vsyncpa [#allocation4], 0
    // Predicated region
    $region2: #{tpu_custom_call.1} parent=1 // pred_check
      _
    $region3: #{tpu_custom_call.1} parent=1 // pred_check_branch
      %9 = sbr.rel (0) target = $region5
    $region4: #{tpu_custom_call.1} parent=1 // pred_region
      %s11 = ssub.s32 256, 256
      %12 = vsyncadd [#allocation3], %s11
      %s14 = sshll.u32 [#allocation2], 4
      %s15 = int_to_ptr.vmem [resolvable:$true] %s14
      %17 = dma.hbm_to_vmem [thread:$0]  %s0, 256, %s15, [#allocation3]
    $region5: #{tpu_custom_call.1} parent=1 // pred_fallthru
      _
    // Predicated region
    $region6: #{tpu_custom_call.1} parent=1 // pred_check
      _
    $region7: #{tpu_custom_call.1} parent=1 // pred_check_branch
      %19 = sbr.rel (0) target = $region9
    $region8: #{tpu_custom_call.1} parent=1 // pred_region
      %20 = dma.done [#allocation3], 256
    $region9: #{tpu_custom_call.1} parent=1 // pred_fallthru
      _
    %v21 = vld [vmem:[#allocation2] sm:$0xff]
    %v22 = vld [vmem:[#allocation2 + $0x8] sm:$0xff]
    %23 = vst [vmem:[#allocation5] sm:$0xff] %v21
    %24 = vst [vmem:[#allocation5 + $0x8] sm:$0xff] %v22
    // Predicated region
    $region10: #{tpu_custom_call.1} parent=1 // pred_check
      _
    $region11: #{tpu_custom_call.1} parent=1 // pred_check_branch
      %26 = sbr.rel (0) target = $region13
    $region12: #{tpu_custom_call.1} parent=1 // pred_region
      %s28 = ssub.s32 256, 256
      %29 = vsyncadd [#allocation4], %s28
      %s31 = sshll.u32 [#allocation5], 4
      %s32 = int_to_ptr.vmem [resolvable:$true] %s31
      %34 = dma.vmem_to_hbm [thread:$0]  %s32, 256, %s1, [#allocation4]
    $region13: #{tpu_custom_call.1} parent=1 // pred_fallthru
      _
    // Predicated region
    $region14: #{tpu_custom_call.1} parent=1 // pred_check
      _
    $region15: #{tpu_custom_call.1} parent=1 // pred_check_branch
      %36 = sbr.rel (0) target = $region17
    $region16: #{tpu_custom_call.1} parent=1 // pred_region
      %37 = dma.done [#allocation4], 256
    $region17: #{tpu_custom_call.1} parent=1 // pred_fallthru
      _
    %38 = vsyncpa [#allocation3], 1
    %39 = vsyncpa [#allocation4], 1

</llo_original>
